<compile_context>
chip_gen: v5e
topology: v5e:2x2
jax: 0.10.0
libtpu: 0.0.40
codegen_flags: <defaults>
</compile_context>

<pallas_src>
import functools

import jax
import jax.numpy as jnp
from jax.experimental import pallas as pl
from jax.experimental.pallas import tpu as pltpu


_FUSED_VMEM_BUDGET = 36 * 1024 * 1024   # use fused path only if est. fits here
_FUSED_VMEM_LIMIT = 48 * 1024 * 1024    # scoped VMEM cap (safe on v7x's 64 MiB)


def _apply_act(y, activation):
    if activation == "relu":
        return jnp.maximum(y, 0.0)
    if activation == "sigmoid":
        return jax.nn.sigmoid(y)
    if activation == "linear":
        return y
    raise ValueError(f"unsupported activation: {activation}")


# --------------------------------------------------------------------------
# Fused whole-decoder kernel (primary path)
# --------------------------------------------------------------------------

def _fused_decoder_kernel(*refs, num_layers, activations, compute_dtype):
    """refs = (x_ref, w0_ref, b0_ref, ..., w{L-1}_ref, b{L-1}_ref, o_ref).

    All layer weights are full-extent VMEM blocks; the running activation h
    stays on-chip for the whole layer chain (no HBM round trips).
    """
    x_ref = refs[0]
    o_ref = refs[-1]
    wb_refs = refs[1:-1]

    h = x_ref[...]
    for l in range(num_layers):
        w_ref = wb_refs[2 * l]
        b_ref = wb_refs[2 * l + 1]
        # bf16 (or f32) MXU operands, f32 accumulation.
        y = jnp.dot(h.astype(compute_dtype), w_ref[...],
                    preferred_element_type=jnp.float32)
        y = y + b_ref[...]                      # f32 bias broadcast over rows
        h = _apply_act(y, activations[l])       # f32 activation math
    o_ref[...] = h.astype(o_ref.dtype)


def _pick_m_tile(m, cap=512):
    """M tile: multiple of 8 dividing M; prefer grid extent >= 2 (v7x TCs)."""
    candidates = [c for c in (512, 256, 128, 64, 32, 16, 8) if c <= cap]
    for t in candidates:
        if m % t == 0 and m // t >= 2:
            return t
    for t in candidates:
        if m % t == 0:
            return t
    return m


def _decoder_cost_estimate(m, k_in0, prepared, activations):
    flops = 0
    w_bytes = 0
    b_bytes = 0
    k_in = k_in0
    for w, b in prepared:
        flops += 2 * m * k_in * int(w.shape[1])
        w_bytes += int(w.size) * w.dtype.itemsize
        b_bytes += int(b.size) * b.dtype.itemsize
        k_in = int(w.shape[1])
    d = int(prepared[-1][0].shape[1])
    transcend = m * d if activations[-1] == "sigmoid" else 0
    x_bytes = m * k_in0 * jnp.dtype(prepared[0][0].dtype).itemsize
    return pl.CostEstimate(flops=flops, transcendentals=transcend,
                           bytes_accessed=x_bytes + w_bytes + b_bytes + m * d * 4)


def _fused_vmem_estimate(m_tile, k, prepared, compute_itemsize):
    w_bytes = sum(int(w.size) * w.dtype.itemsize for w, _ in prepared)
    b_bytes = sum(int(b.size) * b.dtype.itemsize for _, b in prepared)
    d = int(prepared[-1][0].shape[1])
    widths = [k] + [int(w.shape[1]) for w, _ in prepared]
    interm = 3 * m_tile * max(widths) * 4              # f32 intermediates
    return (2 * (w_bytes + b_bytes)                    # (conservatively) 2x bufs
            + 2 * m_tile * k * compute_itemsize        # x double buffer
            + 2 * m_tile * d * 4                       # out double buffer
            + interm)


def _fused_decoder_call(x, prepared, *, activations, compute_dtype):
    M, K = x.shape
    D = int(prepared[-1][0].shape[1])
    tm = _pick_m_tile(M)
    gm = M // tm if (tm != M and M % tm == 0) else 1
    if tm == M:
        gm = 1

    in_specs = [pl.BlockSpec((tm, K), lambda i: (i, 0))]
    args = [x]
    for w, b in prepared:
        kl, nl = int(w.shape[0]), int(w.shape[1])
        in_specs.append(pl.BlockSpec((kl, nl), lambda i: (0, 0)))   # resident W
        in_specs.append(pl.BlockSpec((1, nl), lambda i: (0, 0)))    # resident b
        args.append(w)
        args.append(b)

    kernel = functools.partial(
        _fused_decoder_kernel,
        num_layers=len(prepared),
        activations=tuple(activations),
        compute_dtype=compute_dtype,
    )

    return pl.pallas_call(
        kernel,
        out_shape=jax.ShapeDtypeStruct((M, D), jnp.float32),
        grid_spec=pltpu.PrefetchScalarGridSpec(
            num_scalar_prefetch=0,
            grid=(gm,),
            in_specs=in_specs,
            out_specs=pl.BlockSpec((tm, D), lambda i: (i, 0)),
        ),
        compiler_params=pltpu.CompilerParams(
            dimension_semantics=("parallel",),
            vmem_limit_bytes=_FUSED_VMEM_LIMIT,
        ),
        cost_estimate=_decoder_cost_estimate(M, K, prepared, activations),
    )(*args)


# --------------------------------------------------------------------------
# Per-layer tiled fallback (only when weights would not fit in VMEM)
# --------------------------------------------------------------------------

def _linear_act_kernel_nored(x_ref, w_ref, b_ref, o_ref, *, activation):
    """K fits one tile: no reduction axis, no accumulator scratch."""
    y = jnp.dot(x_ref[...], w_ref[...], preferred_element_type=jnp.float32)
    y = _apply_act(y + b_ref[...], activation)
    o_ref[...] = y.astype(o_ref.dtype)


def _linear_act_kernel_red(x_ref, w_ref, b_ref, o_ref, acc_ref, *, activation):
    k = pl.program_id(2)

    @pl.when(k == 0)
    def _():
        acc_ref[...] = jnp.zeros_like(acc_ref)

    acc_ref[...] += jnp.dot(x_ref[...], w_ref[...],
                            preferred_element_type=jnp.float32)

    @pl.when(k == pl.num_programs(2) - 1)
    def _():
        y = _apply_act(acc_ref[...] + b_ref[...], activation)
        o_ref[...] = y.astype(o_ref.dtype)


def _pick_tile(dim, candidates):
    for t in candidates:
        if t <= dim and dim % t == 0:
            return t
    return dim


def linear_act(x, w, b2, *, activation, compute_dtype):
    """act(x @ w + b) with tiles capped for v5e (16 MiB scoped) / v7x (64 MiB)."""
    x = x.astype(compute_dtype)
    M, K = x.shape
    Kw, N = w.shape
    assert K == Kw and b2.shape == (1, N)

    tm = _pick_tile(M, (256, 128, 64, 32, 16, 8))
    tn = _pick_tile(N, (512, 256, 128))
    tk = _pick_tile(K, (1024, 512, 256, 128))
    gm, gn, gk = M // tm, N // tn, K // tk

    cost = pl.CostEstimate(
        flops=2 * M * N * K,
        transcendentals=M * N if activation == "sigmoid" else 0,
        bytes_accessed=(M * K + K * N) * jnp.dtype(compute_dtype).itemsize
        + N * 4 + M * N * 4,
    )

    if gk == 1:   # specialized epilogue: no accumulator, no pl.when
        kernel = functools.partial(_linear_act_kernel_nored, activation=activation)
        return pl.pallas_call(
            kernel,
            out_shape=jax.ShapeDtypeStruct((M, N), jnp.float32),
            grid_spec=pltpu.PrefetchScalarGridSpec(
                num_scalar_prefetch=0,
                grid=(gm, gn),
                in_specs=[
                    pl.BlockSpec((tm, K), lambda i, j: (i, 0)),
                    pl.BlockSpec((K, tn), lambda i, j: (0, j)),
                    pl.BlockSpec((1, tn), lambda i, j: (0, j)),
                ],
                out_specs=pl.BlockSpec((tm, tn), lambda i, j: (i, j)),
            ),
            compiler_params=pltpu.CompilerParams(
                dimension_semantics=("parallel", "parallel")),
            cost_estimate=cost,
        )(x, w, b2)

    kernel = functools.partial(_linear_act_kernel_red, activation=activation)
    return pl.pallas_call(
        kernel,
        out_shape=jax.ShapeDtypeStruct((M, N), jnp.float32),
        grid_spec=pltpu.PrefetchScalarGridSpec(
            num_scalar_prefetch=0,
            grid=(gm, gn, gk),
            in_specs=[
                pl.BlockSpec((tm, tk), lambda i, j, k: (i, k)),
                pl.BlockSpec((tk, tn), lambda i, j, k: (k, j)),
                pl.BlockSpec((1, tn), lambda i, j, k: (0, j)),
            ],
            out_specs=pl.BlockSpec((tm, tn), lambda i, j, k: (i, j)),
            scratch_shapes=[pltpu.VMEM((tm, tn), jnp.float32)],
        ),
        compiler_params=pltpu.CompilerParams(
            dimension_semantics=("parallel", "parallel", "arbitrary")),
        cost_estimate=cost,
    )(x, w, b2)


# --------------------------------------------------------------------------
# Public API
# --------------------------------------------------------------------------

def prepare_decoder_params(params, *, use_bf16_matmul=True):
    """One-time parameter prep (casts hoisted out of the forward pass).

    params: list of (W, b) with W stored as (in_dim, out_dim) — i.e. torch
            nn.Linear.weight transposed — last pair is the output layer.
    Returns list of (W in compute dtype, b as (1, N) f32).
    """
    compute_dtype = jnp.bfloat16 if use_bf16_matmul else jnp.float32
    prepared = []
    for w, b in params:
        w = jnp.asarray(w)
        b = jnp.asarray(b)
        assert w.ndim == 2 and b.shape == (w.shape[1],)
        prepared.append((w.astype(compute_dtype),
                         b.astype(jnp.float32).reshape(1, -1)))
    return prepared


def decoder_forward(z, prepared, *, activation="relu",
                    output_activation="sigmoid", force_per_layer=False):
    """Pallas implementation of Decoder.forward.

    z:        (N1, ..., Ng, K)
    prepared: output of prepare_decoder_params.
    Returns   (N1, ..., Ng, D) float32, D = prepared[-1][0].shape[1].
    """
    if activation != "relu":
        raise ValueError(f"{activation} is not implemented")
    if output_activation not in ("sigmoid", "linear"):
        raise ValueError(f"{output_activation} is not implemented")

    lead = z.shape[:-1]
    K = z.shape[-1]
    assert K == prepared[0][0].shape[0]
    compute_dtype = jnp.dtype(prepared[0][0].dtype)

    x = z.reshape(-1, K).astype(compute_dtype)
    M = x.shape[0]
    D = int(prepared[-1][0].shape[1])
    acts = ("relu",) * (len(prepared) - 1) + (output_activation,)

    tm = _pick_m_tile(M)
    vmem_est = _fused_vmem_estimate(tm, K, prepared, compute_dtype.itemsize)

    if (not force_per_layer) and vmem_est <= _FUSED_VMEM_BUDGET:
        out = _fused_decoder_call(x, prepared, activations=acts,
                                  compute_dtype=compute_dtype)
    else:
        # Fallback for decoders too wide to keep all weights VMEM-resident.
        h = x
        for (w, b), act in zip(prepared, acts):
            h = linear_act(h, w, b, activation=act, compute_dtype=compute_dtype)
        out = h

    return out.reshape(*lead, D)


if __name__ == "__main__":
    key = jax.random.PRNGKey(0)
    k_z, k_w1, k_b1, k_w2, k_b2 = jax.random.split(key, 5)

    # Decoder(latent_dim=32, reconstructed_dim=(1, 16, 16), intermediate_dims=[64])
    latent_dim = 32
    intermediate_dim = 64
    D = 1 * 16 * 16  # 256

    # Input: N1 x N2 x K  (leading dims 2 x 8, latent dim 32)
    z = jax.random.normal(k_z, (2, 8, latent_dim), dtype=jnp.float32)

    # Parameters stored as (in_dim, out_dim) == torch Linear weight transposed.
    w1 = jax.random.normal(k_w1, (latent_dim, intermediate_dim), jnp.float32) * 0.1
    b1 = jax.random.normal(k_b1, (intermediate_dim,), jnp.float32) * 0.1
    w2 = jax.random.normal(k_w2, (intermediate_dim, D), jnp.float32) * 0.1
    b2 = jax.random.normal(k_b2, (D,), jnp.float32) * 0.1
    params = [(w1, b1), (w2, b2)]

    # One-time parameter prep (bf16 MXU operands, f32 accumulate/bias/act).
    prepared = prepare_decoder_params(params, use_bf16_matmul=True)

    # Primary (fused single-kernel) path.
    out = decoder_forward(z, prepared, activation="relu",
                          output_activation="sigmoid")
    jax.block_until_ready(out)

    # Pure-JAX f32 reference.
    h_ref = jnp.maximum(z.reshape(-1, latent_dim) @ w1 + b1, 0.0)
    out_ref = jax.nn.sigmoid(h_ref @ w2 + b2).reshape(2, 8, D)

    assert out.shape == (2, 8, D), f"bad output shape {out.shape}"
    # bf16 MXU operands -> loosened tolerance vs f32 reference.
    assert jnp.allclose(out, out_ref, atol=2e-2, rtol=0.0), "fused mismatch vs reference"
    assert bool(jnp.all((out >= 0.0) & (out <= 1.0))), "sigmoid range violated"

    # Also exercise the per-layer fallback path (used for very wide decoders).
    out_fb = decoder_forward(z, prepared, activation="relu",
                             output_activation="sigmoid", force_per_layer=True)
    jax.block_until_ready(out_fb)
    assert jnp.allclose(out_fb, out_ref, atol=2e-2, rtol=0.0), "fallback mismatch"

    print("KERNEL_OK")
</pallas_src>

<mosaic_0001>
module attributes {stable_mosaic.version = 11 : i64} {
  func.func @_fused_decoder_kernel(%arg0: i32, %arg1: memref<8x32xbf16, #tpu.memory_space<vmem>>, %arg2: memref<32x64xbf16, #tpu.memory_space<vmem>>, %arg3: memref<1x64xf32, #tpu.memory_space<vmem>>, %arg4: memref<64x256xbf16, #tpu.memory_space<vmem>>, %arg5: memref<1x256xf32, #tpu.memory_space<vmem>>, %arg6: memref<8x256xf32, #tpu.memory_space<vmem>>) attributes {dimension_semantics = [#tpu.dimension_semantics<parallel>], iteration_bounds = array<i64: 2>, scalar_prefetch = 0 : i64, scratch_operands = 0 : i64, tpu.core_type = #tpu.core_type<tc>, window_params = [{transform_indices = @transform_0, window_bounds = array<i64: 8, 32>}, {pipeline_mode = #tpu.pipeline_mode<synchronous>, transform_indices = @transform_1, window_bounds = array<i64: 32, 64>}, {pipeline_mode = #tpu.pipeline_mode<synchronous>, transform_indices = @transform_2, window_bounds = array<i64: 1, 64>}, {pipeline_mode = #tpu.pipeline_mode<synchronous>, transform_indices = @transform_3, window_bounds = array<i64: 64, 256>}, {pipeline_mode = #tpu.pipeline_mode<synchronous>, transform_indices = @transform_4, window_bounds = array<i64: 1, 256>}, {transform_indices = @transform_5, window_bounds = array<i64: 8, 256>}]} {
    %c0 = arith.constant 0 : index
    %c0_0 = arith.constant 0 : index
    %0 = vector.load %arg1[%c0, %c0_0] : memref<8x32xbf16, #tpu.memory_space<vmem>>, vector<8x32xbf16>
    %c0_1 = arith.constant 0 : index
    %c0_2 = arith.constant 0 : index
    %1 = vector.load %arg2[%c0_1, %c0_2] : memref<32x64xbf16, #tpu.memory_space<vmem>>, vector<32x64xbf16>
    %cst = arith.constant dense<0.000000e+00> : vector<8x64xf32>
    %2 = tpu.matmul %0, %1, %cst {dimension_numbers = #tpu.dot_dimension_numbers<[1], [0], [0], [1], [0, 0, 1, 1], [], []>} : vector<8x32xbf16>, vector<32x64xbf16>, vector<8x64xf32> -> vector<8x64xf32>
    %c0_3 = arith.constant 0 : index
    %c0_4 = arith.constant 0 : index
    %3 = vector.load %arg3[%c0_3, %c0_4] : memref<1x64xf32, #tpu.memory_space<vmem>>, vector<1x64xf32>
    %4 = vector.broadcast %3 : vector<1x64xf32> to vector<8x64xf32>
    %5 = arith.addf %2, %4 : vector<8x64xf32>
    %cst_5 = arith.constant 0.000000e+00 : f32
    %6 = vector.broadcast %cst_5 : f32 to vector<8x64xf32>
    %7 = arith.maximumf %5, %6 : vector<8x64xf32>
    %8 = arith.truncf %7 : vector<8x64xf32> to vector<8x64xbf16>
    %c0_6 = arith.constant 0 : index
    %c0_7 = arith.constant 0 : index
    %9 = vector.load %arg4[%c0_6, %c0_7] : memref<64x256xbf16, #tpu.memory_space<vmem>>, vector<64x256xbf16>
    %cst_8 = arith.constant dense<0.000000e+00> : vector<8x256xf32>
    %10 = tpu.matmul %8, %9, %cst_8 {dimension_numbers = #tpu.dot_dimension_numbers<[1], [0], [0], [1], [0, 0, 1, 1], [], []>} : vector<8x64xbf16>, vector<64x256xbf16>, vector<8x256xf32> -> vector<8x256xf32>
    %c0_9 = arith.constant 0 : index
    %c0_10 = arith.constant 0 : index
    %11 = vector.load %arg5[%c0_9, %c0_10] : memref<1x256xf32, #tpu.memory_space<vmem>>, vector<1x256xf32>
    %12 = vector.broadcast %11 : vector<1x256xf32> to vector<8x256xf32>
    %13 = arith.addf %10, %12 : vector<8x256xf32>
    %14 = arith.negf %13 : vector<8x256xf32>
    %15 = math.exp %14 : vector<8x256xf32>
    %cst_11 = arith.constant 1.000000e+00 : f32
    %16 = vector.broadcast %cst_11 : f32 to vector<8x256xf32>
    %17 = arith.addf %16, %15 : vector<8x256xf32>
    %18 = arith.divf %16, %17 : vector<8x256xf32>
    %c0_12 = arith.constant 0 : index
    %c0_13 = arith.constant 0 : index
    %19 = vector.load %arg6[%c0_12, %c0_13] : memref<8x256xf32, #tpu.memory_space<vmem>>, vector<8x256xf32>
    tpu.vector_store %arg6[%c0_12, %c0_13], %18 {strides = array<i32>} : memref<8x256xf32, #tpu.memory_space<vmem>>, vector<8x256xf32>,
    return
  }
  func.func @transform_0(%arg0: i32) -> (i32, i32) {
    %c0_i32 = arith.constant 0 : i32
    %c0_i32_0 = arith.constant 0 : i32
    return %arg0, %c0_i32 : i32, i32
  }
  func.func @transform_1(%arg0: i32) -> (i32, i32) {
    %c0_i32 = arith.constant 0 : i32
    %c0_i32_0 = arith.constant 0 : i32
    %c0_i32_1 = arith.constant 0 : i32
    return %c0_i32, %c0_i32_0 : i32, i32
  }
  func.func @transform_2(%arg0: i32) -> (i32, i32) {
    %c0_i32 = arith.constant 0 : i32
    %c0_i32_0 = arith.constant 0 : i32
    %c0_i32_1 = arith.constant 0 : i32
    return %c0_i32, %c0_i32_0 : i32, i32
  }
  func.func @transform_3(%arg0: i32) -> (i32, i32) {
    %c0_i32 = arith.constant 0 : i32
    %c0_i32_0 = arith.constant 0 : i32
    %c0_i32_1 = arith.constant 0 : i32
    return %c0_i32, %c0_i32_0 : i32, i32
  }
  func.func @transform_4(%arg0: i32) -> (i32, i32) {
    %c0_i32 = arith.constant 0 : i32
    %c0_i32_0 = arith.constant 0 : i32
    %c0_i32_1 = arith.constant 0 : i32
    return %c0_i32, %c0_i32_0 : i32, i32
  }
  func.func @transform_5(%arg0: i32) -> (i32, i32) {
    %c0_i32 = arith.constant 0 : i32
    %c0_i32_0 = arith.constant 0 : i32
    return %arg0, %c0_i32 : i32, i32
  }
}

</mosaic_0001>

<llo_original>
// kernel: tpu_custom_call.1
$region0: #{tpu_custom_call.1}
  #allocation0 [shape = 'u32[]', space=smem, size = 0x4, offset = 0x4, fixed_abs, tag = 'smem constant byte address 0x4 - core index']
  #allocation1 [shape = 'u32[72,128]{1,0:T(1,128)}', space=vmem, size = 0x9000, scoped, tag = 'internal scratch']
  %s0 = inlined_call_operand.hbm [shape: bf16[16,32], index: 0, kind: input, shape index: {}]
  %s1 = inlined_call_operand.hbm [shape: bf16[32,64], index: 1, kind: input, shape index: {}]
  %s2 = inlined_call_operand.vmem [shape: f32[1,64], index: 2, kind: input, shape index: {}]
  %s3 = inlined_call_operand.hbm [shape: bf16[64,256], index: 3, kind: input, shape index: {}]
  %s4 = inlined_call_operand.vmem [shape: f32[1,256], index: 4, kind: input, shape index: {}]
  %s5 = inlined_call_operand.hbm [shape: f32[16,256], index: 5, kind: output, shape index: {}]
  %s6 = sld [smem:[#allocation0]]
  $region65: #{tpu_custom_call.1} parent=0
    _
  %s8 = ssub.s32 1, %s6
  %s9 = scalar_select 0, %s8, %s6
  $region1: #{tpu_custom_call.1} parent=0
    #allocation2 [shape = 'u8[4096]{0}', space=vmem, size = 0x1000, scoped, tag = 'input window, operand 0']
    #allocation3 [shape = 's32[2]{0}', space=sflag, size = 0x8, scoped, tag = 'scoped memory for tpu_custom_call.1']
    #allocation4 [shape = 's32[2]{0}', space=sflag, size = 0x8, scoped, tag = 'scoped memory for tpu_custom_call.1']
    #allocation5 [shape = 'u8[8192]{0}', space=vmem, size = 0x2000, scoped, tag = 'input window, operand 1, single buffered']
    #allocation6 [shape = 's32[1]{0}', space=sflag, size = 0x4, scoped, tag = 'scoped memory for tpu_custom_call.1']
    #allocation7 [shape = 'u8[32768]{0}', space=vmem, size = 0x8000, scoped, tag = 'input window, operand 3, single buffered']
    #allocation8 [shape = 'u8[16384]{0}', space=vmem, size = 0x4000, scoped, tag = 'output window, operand 0']
    %10 = vsyncpa [#allocation3], 0
    %s11 = scalar_lea.sflag [#allocation3], 1
    %12 = vsyncpa %s11, 0
    %13 = vsyncpa [#allocation6], 0
    %14 = vsyncpa [#allocation4], 0
    %s15 = scalar_lea.sflag [#allocation4], 1
    %16 = vsyncpa %s15, 0
    loop: start=0, step=1, limit=4
    $region2: #{tpu_custom_call.1} parent=1 // loop_pre_header
      _
    $region3: #{tpu_custom_call.1} parent=1 // loop_header
      %s18 = sphi 0, %s22
      %p19 = scmp.ge.s32.totalorder %s18, 4
      %s28 = sphi 0, %s30
      %s31 = sphi 0, %s28
      %s32 = sphi 0, %s31
      %s48 = sphi 0, %s32
      %s52 = sphi 0, %s52
      %s54 = sphi 0, %s52
      %s55 = sphi 0, %s54
      %s69 = sphi 0, %s55
      %s73 = sphi 0, %s73
      %s75 = sphi 0, %s73
      %s76 = sphi 0, %s75
      %s90 = sphi 0, %s76
      %s94 = sphi 0, %s94
      %s96 = sphi 0, %s94
      %s97 = sphi 0, %s96
      %s111 = sphi 0, %s97
      %s115 = sphi 0, %s115
      %s117 = sphi 0, %s115
      %s118 = sphi 0, %s117
      %s132 = sphi 0, %s118
      %s138 = sphi 0, %s140
      %s141 = sphi 0, %s138
      %s142 = sphi 0, %s141
      %s158 = sphi 0, %s142
    $region4: #{tpu_custom_call.1} parent=1 // loop_header_branch
      %21 = sbr.rel (%p19) target = $region8
    $region5: #{tpu_custom_call.1} parent=1 // loop_body
      %s23 = ssub.s32 %s18, 1
      %s24 = ssub.s32 %s18, 2
      %s25 = sadd.s32 %s18, 1
      %s26 = ssub.s32 %s18, %s25
      %p27 = scmp.eq.s32.totalorder %s26, 0
      %s29 = sadd.s32 %s28, 1
      %s30 = scalar_select %p27, %s28, %s29
      %p33 = pneg %p27
      %p34 = scmp.eq.s32.totalorder %s18, 1
      %p35 = por %p33, %p34
      %p36 = scmp.ne.s32.totalorder %s28, %s31
      %p37 = scmp.eq.s32.totalorder %s18, 0
      %p38 = por %p36, %p37
      %p39 = scmp.ne.s32.totalorder %s28, %s31
      %p40 = scmp.eq.s32.totalorder %s23, 1
      %p41 = por %p39, %p40
      %p42 = scmp.ne.s32.totalorder %s31, %s32
      %p43 = scmp.eq.s32.totalorder %s23, 0
      %p44 = por %p42, %p43
      %p45 = scmp.ne.s32.totalorder %s31, %s32
      %p46 = scmp.eq.s32.totalorder %s24, 1
      %p47 = por %p45, %p46
      %p49 = scmp.ne.s32.totalorder %s32, %s48
      %p50 = scmp.eq.s32.totalorder %s24, 0
      %p51 = por %p49, %p50
      %s53 = sadd.s32 %s52, 1
      %p56 = scmp.eq.s32.totalorder %s18, 1
      %p57 = scmp.ne.s32.totalorder %s52, %s54
      %p58 = scmp.eq.s32.totalorder %s18, 0
      %p59 = por %p57, %p58
      %p60 = scmp.ne.s32.totalorder %s52, %s54
      %p61 = scmp.eq.s32.totalorder %s23, 1
      %p62 = por %p60, %p61
      %p63 = scmp.ne.s32.totalorder %s54, %s55
      %p64 = scmp.eq.s32.totalorder %s23, 0
      %p65 = por %p63, %p64
      %p66 = scmp.ne.s32.totalorder %s54, %s55
      %p67 = scmp.eq.s32.totalorder %s24, 1
      %p68 = por %p66, %p67
      %p70 = scmp.ne.s32.totalorder %s55, %s69
      %p71 = scmp.eq.s32.totalorder %s24, 0
      %p72 = por %p70, %p71
      %s74 = sadd.s32 %s73, 1
      %p77 = scmp.eq.s32.totalorder %s18, 1
      %p78 = scmp.ne.s32.totalorder %s73, %s75
      %p79 = scmp.eq.s32.totalorder %s18, 0
      %p80 = por %p78, %p79
      %p81 = scmp.ne.s32.totalorder %s73, %s75
      %p82 = scmp.eq.s32.totalorder %s23, 1
      %p83 = por %p81, %p82
      %p84 = scmp.ne.s32.totalorder %s75, %s76
      %p85 = scmp.eq.s32.totalorder %s23, 0
      %p86 = por %p84, %p85
      %p87 = scmp.ne.s32.totalorder %s75, %s76
      %p88 = scmp.eq.s32.totalorder %s24, 1
      %p89 = por %p87, %p88
      %p91 = scmp.ne.s32.totalorder %s76, %s90
      %p92 = scmp.eq.s32.totalorder %s24, 0
      %p93 = por %p91, %p92
      %s95 = sadd.s32 %s94, 1
      %p98 = scmp.eq.s32.totalorder %s18, 1
      %p99 = scmp.ne.s32.totalorder %s94, %s96
      %p100 = scmp.eq.s32.totalorder %s18, 0
      %p101 = por %p99, %p100
      %p102 = scmp.ne.s32.totalorder %s94, %s96
      %p103 = scmp.eq.s32.totalorder %s23, 1
      %p104 = por %p102, %p103
      %p105 = scmp.ne.s32.totalorder %s96, %s97
      %p106 = scmp.eq.s32.totalorder %s23, 0
      %p107 = por %p105, %p106
      %p108 = scmp.ne.s32.totalorder %s96, %s97
      %p109 = scmp.eq.s32.totalorder %s24, 1
      %p110 = por %p108, %p109
      %p112 = scmp.ne.s32.totalorder %s97, %s111
      %p113 = scmp.eq.s32.totalorder %s24, 0
      %p114 = por %p112, %p113
      %s116 = sadd.s32 %s115, 1
      %p119 = scmp.eq.s32.totalorder %s18, 1
      %p120 = scmp.ne.s32.totalorder %s115, %s117
      %p121 = scmp.eq.s32.totalorder %s18, 0
      %p122 = por %p120, %p121
      %p123 = scmp.ne.s32.totalorder %s115, %s117
      %p124 = scmp.eq.s32.totalorder %s23, 1
      %p125 = por %p123, %p124
      %p126 = scmp.ne.s32.totalorder %s117, %s118
      %p127 = scmp.eq.s32.totalorder %s23, 0
      %p128 = por %p126, %p127
      %p129 = scmp.ne.s32.totalorder %s117, %s118
      %p130 = scmp.eq.s32.totalorder %s24, 1
      %p131 = por %p129, %p130
      %p133 = scmp.ne.s32.totalorder %s118, %s132
      %p134 = scmp.eq.s32.totalorder %s24, 0
      %p135 = por %p133, %p134
      %s136 = ssub.s32 %s18, %s25
      %p137 = scmp.eq.s32.totalorder %s136, 0
      %s139 = sadd.s32 %s138, 1
      %s140 = scalar_select %p137, %s138, %s139
      %p143 = pneg %p137
      %p144 = scmp.eq.s32.totalorder %s18, 1
      %p145 = por %p143, %p144
      %p146 = scmp.ne.s32.totalorder %s138, %s141
      %p147 = scmp.eq.s32.totalorder %s18, 0
      %p148 = por %p146, %p147
      %p149 = scmp.ne.s32.totalorder %s138, %s141
      %p150 = scmp.eq.s32.totalorder %s23, 1
      %p151 = por %p149, %p150
      %p152 = scmp.ne.s32.totalorder %s141, %s142
      %p153 = scmp.eq.s32.totalorder %s23, 0
      %p154 = por %p152, %p153
      %p155 = scmp.ne.s32.totalorder %s141, %s142
      %p156 = scmp.eq.s32.totalorder %s24, 1
      %p157 = por %p155, %p156
      %p159 = scmp.ne.s32.totalorder %s142, %s158
      %p160 = scmp.eq.s32.totalorder %s24, 0
      %p161 = por %p159, %p160
      %p162 = scmp.le.s32.totalorder 1, %s18
      %p163 = scmp.lt.s32.totalorder %s18, 3
      %p164 = pnand %p162, %p163
      %p165 = pneg %p164
      // Predicated region
      $region9: #{tpu_custom_call.1} parent=5 // pred_check
        _
      $region10: #{tpu_custom_call.1} parent=5 // pred_check_branch
        %167 = sbr.rel (%p164) target = $region12
      $region11: #{tpu_custom_call.1} parent=5 // pred_region
        %s168 = ssub.s32 %s18, 1
        // Predicated region
        $region13: #{tpu_custom_call.1} parent=11 // pred_check
          %p169 = pneg %p65
        $region14: #{tpu_custom_call.1} parent=11 // pred_check_branch
          %171 = sbr.rel (%p169) target = $region16
        $region15: #{tpu_custom_call.1} parent=11 // pred_region
          %173 = vsyncadd [#allocation6], 0
          %s174 = sshll.u32 %s1, 4
          %s175 = int_to_ptr.hbm [resolvable:$true] %s174
          %s176 = sshll.u32 [#allocation5], 4
          %s177 = int_to_ptr.vmem [resolvable:$true] %s176
          %182 = dma.hbm_to_vmem [thread:$0]  %s175, 256, %s177, [#allocation6], 64, 64, 4
        $region16: #{tpu_custom_call.1} parent=11 // pred_fallthru
          _
        // Predicated region
        $region17: #{tpu_custom_call.1} parent=11 // pred_check
          %p183 = pneg %p86
        $region18: #{tpu_custom_call.1} parent=11 // pred_check_branch
          %185 = sbr.rel (%p183) target = $region20
        $region19: #{tpu_custom_call.1} parent=11 // pred_region
          _
        $region20: #{tpu_custom_call.1} parent=11 // pred_fallthru
          _
        // Predicated region
        $region21: #{tpu_custom_call.1} parent=11 // pred_check
          %p186 = pneg %p107
        $region22: #{tpu_custom_call.1} parent=11 // pred_check_branch
          %188 = sbr.rel (%p186) target = $region24
        $region23: #{tpu_custom_call.1} parent=11 // pred_region
          %190 = vsyncadd [#allocation6], 0
          %s191 = sshll.u32 %s3, 4
          %s192 = int_to_ptr.hbm [resolvable:$true] %s191
          %s193 = sshll.u32 [#allocation7], 4
          %s194 = int_to_ptr.vmem [resolvable:$true] %s193
          %199 = dma.hbm_to_vmem [thread:$0]  %s192, 1024, %s194, [#allocation6], 128, 128, 8
        $region24: #{tpu_custom_call.1} parent=11 // pred_fallthru
          _
        // Predicated region
        $region25: #{tpu_custom_call.1} parent=11 // pred_check
          %p200 = pneg %p128
        $region26: #{tpu_custom_call.1} parent=11 // pred_check_branch
          %202 = sbr.rel (%p200) target = $region28
        $region27: #{tpu_custom_call.1} parent=11 // pred_region
          _
        $region28: #{tpu_custom_call.1} parent=11 // pred_fallthru
          _
      $region12: #{tpu_custom_call.1} parent=5 // pred_fallthru
        _
      %p203 = scmp.lt.s32.totalorder %s18, 2
      // Predicated region
      $region29: #{tpu_custom_call.1} parent=5 // pred_check
        %p204 = pneg %p203
      $region30: #{tpu_custom_call.1} parent=5 // pred_check_branch
        %206 = sbr.rel (%p204) target = $region32
      $region31: #{tpu_custom_call.1} parent=5 // pred_region
        // Predicated region
        $region33: #{tpu_custom_call.1} parent=31 // pred_check
          %p207 = pneg %p38
        $region34: #{tpu_custom_call.1} parent=31 // pred_check_branch
          %209 = sbr.rel (%p207) target = $region36
        $region35: #{tpu_custom_call.1} parent=31 // pred_region
          %s210 = sand.u32 %s28, 1
          %s211 = scalar_lea.sflag [#allocation3], %s210
          %s212 = sand.u32 %s28, 1
          %s213 = smul.addr %s212, 4
          %s214 = scalar_lea.vmem [#allocation2], %s213
          %216 = vsyncadd %s211, 0
          %s217 = smul.addr %s18, 4
          %s218 = scalar_lea.hbm %s0, %s217
          %s220 = sshll.u32 %s218, 4
          %s221 = int_to_ptr.hbm [resolvable:$true] %s220
          %s222 = sshll.u32 %s214, 4
          %s223 = int_to_ptr.vmem [resolvable:$true] %s222
          %225 = dma.hbm_to_vmem [thread:$0]  %s221, 64, %s223, %s211
        $region36: #{tpu_custom_call.1} parent=31 // pred_fallthru
          _
      $region32: #{tpu_custom_call.1} parent=5 // pred_fallthru
        _
      %p226 = scmp.le.s32.totalorder 1, %s18
      %p227 = scmp.lt.s32.totalorder %s18, 3
      %p228 = pnand %p226, %p227
      %p229 = pneg %p228
      // Predicated region
      $region37: #{tpu_custom_call.1} parent=5 // pred_check
        _
      $region38: #{tpu_custom_call.1} parent=5 // pred_check_branch
        %231 = sbr.rel (%p228) target = $region40
      $region39: #{tpu_custom_call.1} parent=5 // pred_region
        %s232 = ssub.s32 %s18, 1
        %s233 = sand.u32 %s31, 1
        %s234 = scalar_lea.sflag [#allocation3], %s233
        %s235 = sand.u32 %s31, 1
        %s236 = smul.addr %s235, 4
        %s237 = scalar_lea.vmem [#allocation2], %s236
        // Predicated region
        $region41: #{tpu_custom_call.1} parent=39 // pred_check
          %p238 = pneg %p44
        $region42: #{tpu_custom_call.1} parent=39 // pred_check_branch
          %240 = sbr.rel (%p238) target = $region44
        $region43: #{tpu_custom_call.1} parent=39 // pred_region
          %242 = dma.done %s234, 64
        $region44: #{tpu_custom_call.1} parent=39 // pred_fallthru
          _
        // Predicated region
        $region45: #{tpu_custom_call.1} parent=39 // pred_check
          %p243 = pneg %p65
        $region46: #{tpu_custom_call.1} parent=39 // pred_check_branch
          %245 = sbr.rel (%p243) target = $region48
        $region47: #{tpu_custom_call.1} parent=39 // pred_region
          %247 = dma.done [#allocation6], 256
        $region48: #{tpu_custom_call.1} parent=39 // pred_fallthru
          _
        // Predicated region
        $region49: #{tpu_custom_call.1} parent=39 // pred_check
          %p248 = pneg %p107
        $region50: #{tpu_custom_call.1} parent=39 // pred_check_branch
          %250 = sbr.rel (%p248) target = $region52
        $region51: #{tpu_custom_call.1} parent=39 // pred_region
          %252 = dma.done [#allocation6], 1024
        $region52: #{tpu_custom_call.1} parent=39 // pred_fallthru
          _
        %s253 = sand.u32 %s31, 1
        %s254 = scalar_lea.sflag [#allocation3], %s253
        %s255 = sand.u32 %s31, 1
        %s256 = smul.addr %s255, 4
        %s257 = scalar_lea.vmem [#allocation2], %s256
        %p258 = pneg %p44
        %p259 = pneg %p41
        %p260 = pneg %p65
        %p261 = pneg %p62
        %p262 = pneg %p86
        %p263 = pneg %p83
        %p264 = pneg %p107
        %p265 = pneg %p104
        %p266 = pneg %p128
        %p267 = pneg %p125
        %p268 = pneg %p154
        %p269 = pneg %p151
        %s270 = sand.u32 %s141, 1
        %s271 = scalar_lea.sflag [#allocation4], %s270
        %s272 = sand.u32 %s141, 1
        %s273 = smul.addr %s272, 16
        %s274 = scalar_lea.vmem [#allocation8], %s273
        %v276 = vld [vmem:[%s237] sm:$0xf]
        %v277 = vld [vmem:[#allocation5] sm:$0xf]
        %v278 = vld [vmem:[#allocation5 + $0x4] sm:$0xf]
        %v279 = vld [vmem:[#allocation5 + $0x8] sm:$0xf]
        %v280 = vld [vmem:[#allocation5 + $0xc] sm:$0xf]
        %v281 = vld [vmem:[%s2] sm:$0x1]
        %v283 = vperm.slane %v281, 0
        %v289 = vunpack.c.l.b16 %v277
        %v290 = vunpack.c.l.b16 %v278
        %v291 = vunpack.c.l.b16 %v279
        %v292 = vunpack.c.l.b16 %v280
        %v293 = vpack.c.b16 %v290, %v289
        %v294 = vpack.c.b16 %v292, %v291
        %vm297 = vcmask 261120
        %v299 = vsel %vm297, %v276, 0
        %301 = vmatpush.bf16.msra.mxu0 0
        %302 = vmatpush.bf16.msra.mxu0 0
        %303 = vmatpush.bf16.msra.mxu0 0
        %304 = vmatpush.bf16.msra.mxu0 0
        %305 = vmatpush.bf16.msra.mxu0 0
        %306 = vmatpush.bf16.msra.mxu0 0
        %307 = vmatpush.bf16.msra.mxu0 %v294
        %308 = vmatpush.bf16.msra.mxu0 %v293
        %309 = vmatmul.bf16.gmra.mxu0 %v299
        %v310 = vpop.f32.mrf.mxu0
        %v311 = vadd.f32 %v283, %v310
        %v312 = vpop.f32.mrf.mxu0
        %313 = vdwg.mxu0
        %v314 = vmax.f32 %v311, 0.0
        %v315 = vpack.c.bf16 %v314, %v314
        %v316 = vld [vmem:[#allocation7] sm:$0xff]
        %v317 = vld [vmem:[#allocation7 + $0x8] sm:$0xff]
        %v318 = vld [vmem:[#allocation7 + $0x10] sm:$0xff]
        %v319 = vld [vmem:[#allocation7 + $0x18] sm:$0xff]
        %v320 = vld [vmem:[#allocation7 + $0x20] sm:$0xff]
        %v321 = vld [vmem:[#allocation7 + $0x28] sm:$0xff]
        %v322 = vld [vmem:[#allocation7 + $0x30] sm:$0xff]
        %v323 = vld [vmem:[#allocation7 + $0x38] sm:$0xff]
        %v324 = vld [vmem:[%s4] sm:$0x3]
        %v326 = vperm.slane %v324, 0
        %v327 = vperm.slane %v324, 1
        %v338 = vunpack.c.l.b16 %v316
        %v339 = vunpack.c.h.b16 %v316
        %v340 = vunpack.c.l.b16 %v317
        %v341 = vunpack.c.h.b16 %v317
        %v342 = vunpack.c.l.b16 %v318
        %v343 = vunpack.c.h.b16 %v318
        %v344 = vunpack.c.l.b16 %v319
        %v345 = vunpack.c.h.b16 %v319
        %v346 = vunpack.c.l.b16 %v320
        %v347 = vunpack.c.h.b16 %v320
        %v348 = vunpack.c.l.b16 %v321
        %v349 = vunpack.c.h.b16 %v321
        %v350 = vunpack.c.l.b16 %v322
        %v351 = vunpack.c.h.b16 %v322
        %v352 = vunpack.c.l.b16 %v323
        %v353 = vunpack.c.h.b16 %v323
        %v354 = vpack.c.b16 %v340, %v338
        %v355 = vpack.c.b16 %v341, %v339
        %v356 = vpack.c.b16 %v344, %v342
        %v357 = vpack.c.b16 %v345, %v343
        %v358 = vpack.c.b16 %v348, %v346
        %v359 = vpack.c.b16 %v349, %v347
        %v360 = vpack.c.b16 %v352, %v350
        %v361 = vpack.c.b16 %v353, %v351
        %vm370 = vcmask 523264
        %v372 = vsel %vm370, %v315, 0
        %374 = vmatpush.bf16.msra.mxu0 0
        %375 = vmatpush.bf16.msra.mxu0 0
        %376 = vmatpush.bf16.msra.mxu0 0
        %377 = vmatpush.bf16.msra.mxu0 0
        %378 = vmatpush.bf16.msra.mxu0 %v360
        %379 = vmatpush.bf16.msra.mxu0 %v358
        %380 = vmatpush.bf16.msra.mxu0 %v356
        %381 = vmatpush.bf16.msra.mxu0 %v354
        %382 = vmatmul.bf16.gmra.mxu0 %v372
        %v383 = vpop.f32.mrf.mxu0
        %v384 = vadd.f32 %v326, %v383
        %v385 = vpop.f32.mrf.mxu0
        %386 = vdwg.mxu0
        %387 = vmatpush.bf16.msra.mxu0 0
        %388 = vmatpush.bf16.msra.mxu0 0
        %389 = vmatpush.bf16.msra.mxu0 0
        %390 = vmatpush.bf16.msra.mxu0 0
        %391 = vmatpush.bf16.msra.mxu0 %v361
        %392 = vmatpush.bf16.msra.mxu0 %v359
        %393 = vmatpush.bf16.msra.mxu0 %v357
        %394 = vmatpush.bf16.msra.mxu0 %v355
        %395 = vmatmul.bf16.gmra.mxu0 %v372
        %v396 = vpop.f32.mrf.mxu0
        %v397 = vadd.f32 %v327, %v396
        %v398 = vpop.f32.mrf.mxu0
        %399 = vdwg.mxu0
        %v400 = vxor.u32 %v384, 2147483648
        %v401 = vxor.u32 %v397, 2147483648
        %v402 = vmul.f32 %v400, 1.442695
        %v403 = vpow.pop %v402
        %v404 = vmul.f32 %v401, 1.442695
        %v405 = vpow.pop %v404
        %v406 = vadd.f32 %v403, 1.0
        %v407 = vadd.f32 %v405, 1.0
        %v408 = vrcp.pop %v406
        %v409 = vmul.f32 %v406, %v408
        %v410 = vsub.f32 1.0, %v409
        %v411 = vmul.f32 %v408, %v410
        %v412 = vadd.f32 %v408, %v411
        %vm413 = vweird.f32 %v406
        %vm414 = vweird.f32 %v408
        %vm415 = vmor %vm413, %vm414
        %v416 = vsel %vm415, %v408, %v412
        %v417 = vand.u32 2147483647, %v406
        %vm418 = vcmp.eq.f32.partialorder %v417, 8.507059e+37
        %v419 = vand.u32 %v406, 2147483648
        %v420 = vor.u32 1.1754944e-38, %v419
        %v421 = vsel %vm418, %v420, %v416
        %v422 = vmul.f32 1.0, %v421
        %v423 = vrcp.pop %v407
        %v424 = vmul.f32 %v407, %v423
        %v425 = vsub.f32 1.0, %v424
        %v426 = vmul.f32 %v423, %v425
        %v427 = vadd.f32 %v423, %v426
        %vm428 = vweird.f32 %v407
        %vm429 = vweird.f32 %v423
        %vm430 = vmor %vm428, %vm429
        %v431 = vsel %vm430, %v423, %v427
        %v432 = vand.u32 2147483647, %v407
        %vm433 = vcmp.eq.f32.partialorder %v432, 8.507059e+37
        %v434 = vand.u32 %v407, 2147483648
        %v435 = vor.u32 1.1754944e-38, %v434
        %v436 = vsel %vm433, %v435, %v431
        %v437 = vmul.f32 1.0, %v436
        %438 = vst [vmem:[%s274] sm:$0xff] %v422
        %439 = vst [vmem:[%s274 + $0x8] sm:$0xff] %v437
        %s440 = sand.u32 %s141, 1
        %s441 = scalar_lea.sflag [#allocation4], %s440
        %s442 = sand.u32 %s141, 1
        %s443 = smul.addr %s442, 16
        %s444 = scalar_lea.vmem [#allocation8], %s443
        // Predicated region
        $region53: #{tpu_custom_call.1} parent=39 // pred_check
          %p445 = pneg %p151
        $region54: #{tpu_custom_call.1} parent=39 // pred_check_branch
          %447 = sbr.rel (%p445) target = $region56
        $region55: #{tpu_custom_call.1} parent=39 // pred_region
          %449 = vsyncadd %s441, 0
          %s450 = smul.addr %s23, 2
          %s451 = smul.addr %s450, 8
          %s452 = scalar_lea.hbm %s5, %s451
          %s454 = sshll.u32 %s444, 4
          %s455 = int_to_ptr.vmem [resolvable:$true] %s454
          %s456 = sshll.u32 %s452, 4
          %s457 = int_to_ptr.hbm [resolvable:$true] %s456
          %459 = dma.vmem_to_hbm [thread:$0]  %s455, 256, %s457, %s441
        $region56: #{tpu_custom_call.1} parent=39 // pred_fallthru
          _
      $region40: #{tpu_custom_call.1} parent=5 // pred_fallthru
        _
      %p460 = scmp.le.s32.totalorder 2, %s18
      // Predicated region
      $region57: #{tpu_custom_call.1} parent=5 // pred_check
        %p461 = pneg %p460
      $region58: #{tpu_custom_call.1} parent=5 // pred_check_branch
        %463 = sbr.rel (%p461) target = $region60
      $region59: #{tpu_custom_call.1} parent=5 // pred_region
        %s464 = ssub.s32 %s18, 2
        // Predicated region
        $region61: #{tpu_custom_call.1} parent=59 // pred_check
          %p465 = pneg %p157
        $region62: #{tpu_custom_call.1} parent=59 // pred_check_branch
          %467 = sbr.rel (%p465) target = $region64
        $region63: #{tpu_custom_call.1} parent=59 // pred_region
          %s468 = sand.u32 %s142, 1
          %s469 = scalar_lea.sflag [#allocation4], %s468
          %s470 = sand.u32 %s142, 1
          %s471 = smul.addr %s470, 16
          %s472 = scalar_lea.vmem [#allocation8], %s471
          %474 = dma.done %s469, 256
        $region64: #{tpu_custom_call.1} parent=59 // pred_fallthru
          _
      $region60: #{tpu_custom_call.1} parent=5 // pred_fallthru
        _
    $region6: #{tpu_custom_call.1} parent=1 // loop_footer
      %s22 = sadd.s32 1, %s18
    $region7: #{tpu_custom_call.1} parent=1 // loop_footer_branch
      %17 = sbr.rel target = $region3
    $region8: #{tpu_custom_call.1} parent=1 // loop_exit
      _
    %475 = vsyncpa [#allocation3], 1
    %s476 = scalar_lea.sflag [#allocation3], 1
    %477 = vsyncpa %s476, 1
    %478 = vsyncpa [#allocation6], 1
    %479 = vsyncpa [#allocation4], 1
    %s480 = scalar_lea.sflag [#allocation4], 1
    %481 = vsyncpa %s480, 1

</llo_original>
